<compile_context>
chip_gen: v5e
topology: v5e:2x2
jax: 0.10.0
libtpu: 0.0.40
codegen_flags: <defaults>
</compile_context>

<pallas_src>
import functools

import jax
import jax.numpy as jnp
from jax.experimental import pallas as pl
from jax.experimental.pallas import tpu as pltpu


_VMEM_LIMIT_BYTES = 40 * 1024 * 1024    # safe on v5e/v6e (128 MiB) and v7x (64 MiB)
_TARGET_BLOCK_BYTES = 2 * 1024 * 1024   # ~2 MiB x-block per streaming grid step
_FUSED_SLAB_BYTES = 4 * 1024 * 1024     # max per-batch (C, S) slab for the fused path


# --------------------------------------------------------------------------- #
# Fused single-pass kernel: reduce + excitation + scale, 1 read / 1 write of x.
# --------------------------------------------------------------------------- #
def _make_fused_kernel(inv_s):
    def kernel(x_ref, w1t_ref, w2_ref, o_ref):
        # x_ref/o_ref: (1, C, S); w1t_ref: (C, C//r) == W1.T; w2_ref: (C, C//r) == W2
        xv = x_ref[...]                                                   # (1, C, S)
        ssum = jnp.sum(xv.astype(jnp.float32), axis=-1, keepdims=True)    # (1, C, 1)
        mean = ssum[0] * inv_s                                            # (C, 1) f32

        # h[j] = relu( sum_c W1[j, c] * mean[c] )   -> sublane reduction, no MXU
        h = jnp.maximum(
            jnp.sum(w1t_ref[...].astype(jnp.float32) * mean,
                    axis=0, keepdims=True),
            0.0)                                                          # (1, C//r)

        # z[c] = sum_j W2[c, j] * h[j]              -> lane reduction
        z = jnp.sum(w2_ref[...].astype(jnp.float32) * h,
                    axis=1, keepdims=True)                                # (C, 1)
        gate = 1.0 / (1.0 + jnp.exp(-z))                                  # sigmoid

        o_ref[...] = xv * gate.astype(xv.dtype)                           # (1, C, S)

    return kernel


def _se_fused(x3, w1, w2):
    B, C, S = x3.shape
    Cr = w1.shape[0]
    w1t = jnp.transpose(w1).astype(jnp.float32)   # (C, C//r)
    w2f = w2.astype(jnp.float32)                  # (C, C//r)

    return pl.pallas_call(
        _make_fused_kernel(1.0 / S),
        out_shape=jax.ShapeDtypeStruct((B, C, S), x3.dtype),
        grid_spec=pltpu.PrefetchScalarGridSpec(
            num_scalar_prefetch=0,
            grid=(B,),
            in_specs=[
                pl.BlockSpec((1, C, S), lambda b: (b, 0, 0)),
                pl.BlockSpec((C, Cr), lambda b: (0, 0)),
                pl.BlockSpec((C, Cr), lambda b: (0, 0)),
            ],
            out_specs=pl.BlockSpec((1, C, S), lambda b: (b, 0, 0)),
        ),
        compiler_params=pltpu.CompilerParams(
            dimension_semantics=("parallel",),
            vmem_limit_bytes=_VMEM_LIMIT_BYTES,
        ),
    )(x3, w1t, w2f)


# --------------------------------------------------------------------------- #
# Streaming two-pass path: lane-dense tiled reduce, XLA excitation, tiled scale.
# --------------------------------------------------------------------------- #
def _choose_s_tile(S, C, itemsize):
    """Pick a lane-dense spatial tile (multiple of 128 or full S), ~2 MiB blocks."""
    slab = C * S * itemsize
    if slab <= _TARGET_BLOCK_BYTES or S < 128:
        return S, False                       # whole spatial axis, one modest block
    t_max = (S // 128) * 128
    t_target = (_TARGET_BLOCK_BYTES // (C * itemsize)) // 128 * 128
    t_target = max(128, min(t_target, t_max))
    t = t_target
    while t >= 128:                           # prefer an exact lane-aligned divisor
        if S % t == 0:
            return t, False
        t -= 128
    return t_target, True                     # ragged: mask the tail in-kernel


def _make_reduce_kernel(S, tS, ragged):
    def kernel(x_ref, sum_ref):
        # x_ref: (1, C, tS); sum_ref: (1, C, 1) — VMEM-resident across the S axis.
        @pl.when(pl.program_id(1) == 0)
        def _():
            sum_ref[...] = jnp.zeros_like(sum_ref)

        xv = x_ref[...].astype(jnp.float32)
        if ragged:
            pos = pl.program_id(1) * tS + jax.lax.broadcasted_iota(
                jnp.int32, xv.shape, 2)
            xv = jnp.where(pos < S, xv, 0.0)
        sum_ref[...] += jnp.sum(xv, axis=-1, keepdims=True)

    return kernel


def _scale_kernel(x_ref, y_ref, o_ref):
    # x_ref/o_ref: (1, C, tS); y_ref: (1, C, 1) per-(batch, channel) gate.
    o_ref[...] = x_ref[...] * y_ref[...]


def _se_streaming(x3, w1, w2, tS, ragged):
    B, C, S = x3.shape
    n_s = pl.cdiv(S, tS)

    # ---- pass 1: per-(batch, channel) spatial sum --------------------------
    sums = pl.pallas_call(
        _make_reduce_kernel(S, tS, ragged),
        out_shape=jax.ShapeDtypeStruct((B, C, 1), jnp.float32),
        grid_spec=pltpu.PrefetchScalarGridSpec(
            num_scalar_prefetch=0,
            grid=(B, n_s),
            in_specs=[pl.BlockSpec((1, C, tS), lambda b, s: (b, 0, s))],
            out_specs=pl.BlockSpec((1, C, 1), lambda b, s: (b, 0, 0)),
        ),
        compiler_params=pltpu.CompilerParams(
            dimension_semantics=("parallel", "arbitrary"),
            vmem_limit_bytes=_VMEM_LIMIT_BYTES,
        ),
    )(x3)

    # ---- excitation: tiny batched FCs in plain XLA -------------------------
    mean = sums[:, :, 0] * jnp.float32(1.0 / S)                 # (B, C)
    h = jnp.maximum(mean @ w1.T.astype(jnp.float32), 0.0)       # (B, C//r)
    y = jax.nn.sigmoid(h @ w2.T.astype(jnp.float32))            # (B, C)
    y3 = y[:, :, None].astype(x3.dtype)                         # (B, C, 1)

    # ---- pass 2: broadcast-scale x by the channel gate ----------------------
    return pl.pallas_call(
        _scale_kernel,
        out_shape=jax.ShapeDtypeStruct((B, C, S), x3.dtype),
        grid_spec=pltpu.PrefetchScalarGridSpec(
            num_scalar_prefetch=0,
            grid=(B, n_s),
            in_specs=[
                pl.BlockSpec((1, C, tS), lambda b, s: (b, 0, s)),
                pl.BlockSpec((1, C, 1), lambda b, s: (b, 0, 0)),
            ],
            out_specs=pl.BlockSpec((1, C, tS), lambda b, s: (b, 0, s)),
        ),
        compiler_params=pltpu.CompilerParams(
            dimension_semantics=("parallel", "parallel"),
            vmem_limit_bytes=_VMEM_LIMIT_BYTES,
        ),
    )(x3, y3)


# --------------------------------------------------------------------------- #
# Public entry point.
# --------------------------------------------------------------------------- #
def se_block_v3(x, w1, w2, *, force_streaming=False, force_s_tile=None):
    """x: (B, C, D, H, W); w1: (C//r, C); w2: (C, C//r). Returns x * SE-gate."""
    B, C, D, H, W = x.shape
    S = D * H * W
    x3 = x.reshape(B, C, S)
    slab_bytes = C * S * x.dtype.itemsize

    if not force_streaming and slab_bytes <= _FUSED_SLAB_BYTES:
        out3 = _se_fused(x3, w1, w2)
    else:
        if force_s_tile is not None:
            tS = force_s_tile
            ragged = (S % tS) != 0
        else:
            tS, ragged = _choose_s_tile(S, C, x.dtype.itemsize)
        out3 = _se_streaming(x3, w1, w2, tS, ragged)

    return out3.reshape(B, C, D, H, W)


def reference(x, w1, w2):
    # pure-JAX reference mirroring the PyTorch forward
    sq = jnp.mean(x, axis=(2, 3, 4))                     # (B, C)
    h = jnp.maximum(sq @ w1.T, 0.0)                      # (B, C//r)
    y = jax.nn.sigmoid(h @ w2.T)                         # (B, C)
    return x * y[:, :, None, None, None]


if __name__ == "__main__":
    # shapes consistent with the module: bs=2, channel=8 (r=4 -> 2)
    B, C, r = 2, 8, 4

    key = jax.random.PRNGKey(0)
    kx, k1, k2, kx2 = jax.random.split(key, 4)
    # nn.Linear weight shapes: (out_features, in_features)
    w1 = jax.random.normal(k1, (C // r, C), dtype=jnp.float32) * 0.1
    w2 = jax.random.normal(k2, (C, C // r), dtype=jnp.float32) * 0.1

    # ---- fused single-pass path (small per-batch slab) ----------------------
    D, H, W = 4, 8, 8
    x = jax.random.normal(kx, (B, C, D, H, W), dtype=jnp.float32)
    out = jax.block_until_ready(jax.jit(se_block_v3)(x, w1, w2))
    ref = reference(x, w1, w2)
    assert out.shape == (B, C, D, H, W)
    assert jnp.allclose(out, ref, atol=1e-5, rtol=1e-5), "fused path mismatch"

    # ---- streaming two-pass path, forced ragged lane tiling (S=192, tile=128)
    D2, H2, W2 = 4, 8, 6
    x2 = jax.random.normal(kx2, (B, C, D2, H2, W2), dtype=jnp.float32)
    stream_fn = jax.jit(functools.partial(
        se_block_v3, force_streaming=True, force_s_tile=128))
    out2 = jax.block_until_ready(stream_fn(x2, w1, w2))
    ref2 = reference(x2, w1, w2)
    assert jnp.allclose(out2, ref2, atol=1e-5, rtol=1e-5), "streaming path mismatch"

    print("KERNEL_OK")
</pallas_src>

<mosaic_0001>
module attributes {stable_mosaic.version = 11 : i64} {
  func.func @kernel(%arg0: i32, %arg1: memref<1x8x256xf32, #tpu.memory_space<vmem>>, %arg2: memref<8x2xf32, #tpu.memory_space<vmem>>, %arg3: memref<8x2xf32, #tpu.memory_space<vmem>>, %arg4: memref<1x8x256xf32, #tpu.memory_space<vmem>>) attributes {dimension_semantics = [#tpu.dimension_semantics<parallel>], iteration_bounds = array<i64: 2>, scalar_prefetch = 0 : i64, scratch_operands = 0 : i64, tpu.core_type = #tpu.core_type<tc>, window_params = [{transform_indices = @transform_0, window_bounds = array<i64: 1, 8, 256>}, {pipeline_mode = #tpu.pipeline_mode<synchronous>, transform_indices = @transform_1, window_bounds = array<i64: 8, 2>}, {pipeline_mode = #tpu.pipeline_mode<synchronous>, transform_indices = @transform_2, window_bounds = array<i64: 8, 2>}, {transform_indices = @transform_3, window_bounds = array<i64: 1, 8, 256>}]} {
    %c0 = arith.constant 0 : index
    %c0_0 = arith.constant 0 : index
    %c0_1 = arith.constant 0 : index
    %0 = vector.load %arg1[%c0, %c0_0, %c0_1] : memref<1x8x256xf32, #tpu.memory_space<vmem>>, vector<1x8x256xf32>
    %cst = arith.constant dense<0.000000e+00> : vector<1x8xf32>
    %1 = vector.multi_reduction <add>, %0, %cst [2] : vector<1x8x256xf32> to vector<1x8xf32>
    %2 = vector.shape_cast %1 : vector<1x8xf32> to vector<1x8x1xf32>
    %3 = vector.shape_cast %2 : vector<1x8x1xf32> to vector<8x1xf32>
    %cst_2 = arith.constant 3.906250e-03 : f32
    %4 = vector.broadcast %cst_2 : f32 to vector<8x1xf32>
    %5 = arith.mulf %3, %4 : vector<8x1xf32>
    %c0_3 = arith.constant 0 : index
    %c0_4 = arith.constant 0 : index
    %6 = vector.load %arg2[%c0_3, %c0_4] : memref<8x2xf32, #tpu.memory_space<vmem>>, vector<8x2xf32>
    %7 = vector.broadcast %5 : vector<8x1xf32> to vector<8x2xf32>
    %8 = arith.mulf %6, %7 : vector<8x2xf32>
    %cst_5 = arith.constant dense<0.000000e+00> : vector<2xf32>
    %9 = vector.multi_reduction <add>, %8, %cst_5 [0] : vector<8x2xf32> to vector<2xf32>
    %10 = vector.shape_cast %9 : vector<2xf32> to vector<1x2xf32>
    %cst_6 = arith.constant 0.000000e+00 : f32
    %11 = vector.broadcast %cst_6 : f32 to vector<1x2xf32>
    %12 = arith.maximumf %10, %11 : vector<1x2xf32>
    %c0_7 = arith.constant 0 : index
    %c0_8 = arith.constant 0 : index
    %13 = vector.load %arg3[%c0_7, %c0_8] : memref<8x2xf32, #tpu.memory_space<vmem>>, vector<8x2xf32>
    %14 = vector.broadcast %12 : vector<1x2xf32> to vector<8x2xf32>
    %15 = arith.mulf %13, %14 : vector<8x2xf32>
    %cst_9 = arith.constant dense<0.000000e+00> : vector<8xf32>
    %16 = vector.multi_reduction <add>, %15, %cst_9 [1] : vector<8x2xf32> to vector<8xf32>
    %17 = vector.shape_cast %16 : vector<8xf32> to vector<8x1xf32>
    %cst_10 = arith.constant 0.000000e+00 : f32
    %18 = vector.broadcast %cst_10 : f32 to vector<8x1xf32>
    %19 = arith.subf %18, %17 : vector<8x1xf32>
    %20 = math.exp %19 : vector<8x1xf32>
    %cst_11 = arith.constant 1.000000e+00 : f32
    %21 = vector.broadcast %cst_11 : f32 to vector<8x1xf32>
    %22 = arith.addf %21, %20 : vector<8x1xf32>
    %cst_12 = arith.constant 1.000000e+00 : f32
    %23 = vector.broadcast %cst_12 : f32 to vector<8x1xf32>
    %24 = arith.divf %23, %22 : vector<8x1xf32>
    %25 = vector.shape_cast %24 : vector<8x1xf32> to vector<1x8x1xf32>
    %26 = vector.broadcast %25 : vector<1x8x1xf32> to vector<1x8x256xf32>
    %27 = arith.mulf %0, %26 : vector<1x8x256xf32>
    %c0_13 = arith.constant 0 : index
    %c0_14 = arith.constant 0 : index
    %c0_15 = arith.constant 0 : index
    %28 = vector.load %arg4[%c0_13, %c0_14, %c0_15] : memref<1x8x256xf32, #tpu.memory_space<vmem>>, vector<1x8x256xf32>
    tpu.vector_store %arg4[%c0_13, %c0_14, %c0_15], %27 {strides = array<i32>} : memref<1x8x256xf32, #tpu.memory_space<vmem>>, vector<1x8x256xf32>,
    return
  }
  func.func @transform_0(%arg0: i32) -> (i32, i32, i32) {
    %c0_i32 = arith.constant 0 : i32
    %c0_i32_0 = arith.constant 0 : i32
    %c0_i32_1 = arith.constant 0 : i32
    return %arg0, %c0_i32, %c0_i32_0 : i32, i32, i32
  }
  func.func @transform_1(%arg0: i32) -> (i32, i32) {
    %c0_i32 = arith.constant 0 : i32
    %c0_i32_0 = arith.constant 0 : i32
    %c0_i32_1 = arith.constant 0 : i32
    return %c0_i32, %c0_i32_0 : i32, i32
  }
  func.func @transform_2(%arg0: i32) -> (i32, i32) {
    %c0_i32 = arith.constant 0 : i32
    %c0_i32_0 = arith.constant 0 : i32
    %c0_i32_1 = arith.constant 0 : i32
    return %c0_i32, %c0_i32_0 : i32, i32
  }
  func.func @transform_3(%arg0: i32) -> (i32, i32, i32) {
    %c0_i32 = arith.constant 0 : i32
    %c0_i32_0 = arith.constant 0 : i32
    %c0_i32_1 = arith.constant 0 : i32
    return %arg0, %c0_i32, %c0_i32_0 : i32, i32, i32
  }
}

</mosaic_0001>

<llo_original>
// kernel: se_block_v3.1
$region0: #{se_block_v3.1}
  #allocation0 [shape = 'u32[]', space=smem, size = 0x4, offset = 0x4, fixed_abs, tag = 'smem constant byte address 0x4 - core index']
  #allocation1 [shape = 'u32[72,128]{1,0:T(1,128)}', space=vmem, size = 0x9000, scoped, tag = 'internal scratch']
  %s0 = inlined_call_operand.vmem [shape: f32[2,8,256], index: 0, kind: input, shape index: {}]
  %s1 = inlined_call_operand.vmem [shape: f32[8,2], index: 1, kind: input, shape index: {}]
  %s2 = inlined_call_operand.vmem [shape: f32[8,2], index: 2, kind: input, shape index: {}]
  %s3 = inlined_call_operand.vmem [shape: f32[2,8,256], index: 3, kind: output, shape index: {}]
  %s4 = sld [smem:[#allocation0]]
  $region45: #{se_block_v3.1} parent=0
    _
  %s6 = ssub.s32 1, %s4
  %s7 = scalar_select 0, %s6, %s4
  loop: start=0, step=1, limit=4
  $region2: #{se_block_v3.1} parent=0 // loop_pre_header
    _
  $region3: #{se_block_v3.1} parent=0 // loop_header
    %s9 = sphi 0, %s13
    %p10 = scmp.ge.s32.totalorder %s9, 4
    %s19 = sphi 0, %s21
    %s22 = sphi 0, %s19
    %s23 = sphi 0, %s22
    %s39 = sphi 0, %s23
    %s43 = sphi 0, %s43
    %s45 = sphi 0, %s43
    %s46 = sphi 0, %s45
    %s60 = sphi 0, %s46
    %s64 = sphi 0, %s64
    %s66 = sphi 0, %s64
    %s67 = sphi 0, %s66
    %s81 = sphi 0, %s67
    %s87 = sphi 0, %s89
    %s90 = sphi 0, %s87
    %s91 = sphi 0, %s90
    %s107 = sphi 0, %s91
  $region4: #{se_block_v3.1} parent=0 // loop_header_branch
    %12 = sbr.rel (%p10) target = $region8
  $region5: #{se_block_v3.1} parent=0 // loop_body
    %s14 = ssub.s32 %s9, 1
    %s15 = ssub.s32 %s9, 2
    %s16 = sadd.s32 %s9, 1
    %s17 = ssub.s32 %s9, %s16
    %p18 = scmp.eq.s32.totalorder %s17, 0
    %s20 = sadd.s32 %s19, 1
    %s21 = scalar_select %p18, %s19, %s20
    %p24 = pneg %p18
    %p25 = scmp.eq.s32.totalorder %s9, 1
    %p26 = por %p24, %p25
    %p27 = scmp.ne.s32.totalorder %s19, %s22
    %p28 = scmp.eq.s32.totalorder %s9, 0
    %p29 = por %p27, %p28
    %p30 = scmp.ne.s32.totalorder %s19, %s22
    %p31 = scmp.eq.s32.totalorder %s14, 1
    %p32 = por %p30, %p31
    %p33 = scmp.ne.s32.totalorder %s22, %s23
    %p34 = scmp.eq.s32.totalorder %s14, 0
    %p35 = por %p33, %p34
    %p36 = scmp.ne.s32.totalorder %s22, %s23
    %p37 = scmp.eq.s32.totalorder %s15, 1
    %p38 = por %p36, %p37
    %p40 = scmp.ne.s32.totalorder %s23, %s39
    %p41 = scmp.eq.s32.totalorder %s15, 0
    %p42 = por %p40, %p41
    %s44 = sadd.s32 %s43, 1
    %p47 = scmp.eq.s32.totalorder %s9, 1
    %p48 = scmp.ne.s32.totalorder %s43, %s45
    %p49 = scmp.eq.s32.totalorder %s9, 0
    %p50 = por %p48, %p49
    %p51 = scmp.ne.s32.totalorder %s43, %s45
    %p52 = scmp.eq.s32.totalorder %s14, 1
    %p53 = por %p51, %p52
    %p54 = scmp.ne.s32.totalorder %s45, %s46
    %p55 = scmp.eq.s32.totalorder %s14, 0
    %p56 = por %p54, %p55
    %p57 = scmp.ne.s32.totalorder %s45, %s46
    %p58 = scmp.eq.s32.totalorder %s15, 1
    %p59 = por %p57, %p58
    %p61 = scmp.ne.s32.totalorder %s46, %s60
    %p62 = scmp.eq.s32.totalorder %s15, 0
    %p63 = por %p61, %p62
    %s65 = sadd.s32 %s64, 1
    %p68 = scmp.eq.s32.totalorder %s9, 1
    %p69 = scmp.ne.s32.totalorder %s64, %s66
    %p70 = scmp.eq.s32.totalorder %s9, 0
    %p71 = por %p69, %p70
    %p72 = scmp.ne.s32.totalorder %s64, %s66
    %p73 = scmp.eq.s32.totalorder %s14, 1
    %p74 = por %p72, %p73
    %p75 = scmp.ne.s32.totalorder %s66, %s67
    %p76 = scmp.eq.s32.totalorder %s14, 0
    %p77 = por %p75, %p76
    %p78 = scmp.ne.s32.totalorder %s66, %s67
    %p79 = scmp.eq.s32.totalorder %s15, 1
    %p80 = por %p78, %p79
    %p82 = scmp.ne.s32.totalorder %s67, %s81
    %p83 = scmp.eq.s32.totalorder %s15, 0
    %p84 = por %p82, %p83
    %s85 = ssub.s32 %s9, %s16
    %p86 = scmp.eq.s32.totalorder %s85, 0
    %s88 = sadd.s32 %s87, 1
    %s89 = scalar_select %p86, %s87, %s88
    %p92 = pneg %p86
    %p93 = scmp.eq.s32.totalorder %s9, 1
    %p94 = por %p92, %p93
    %p95 = scmp.ne.s32.totalorder %s87, %s90
    %p96 = scmp.eq.s32.totalorder %s9, 0
    %p97 = por %p95, %p96
    %p98 = scmp.ne.s32.totalorder %s87, %s90
    %p99 = scmp.eq.s32.totalorder %s14, 1
    %p100 = por %p98, %p99
    %p101 = scmp.ne.s32.totalorder %s90, %s91
    %p102 = scmp.eq.s32.totalorder %s14, 0
    %p103 = por %p101, %p102
    %p104 = scmp.ne.s32.totalorder %s90, %s91
    %p105 = scmp.eq.s32.totalorder %s15, 1
    %p106 = por %p104, %p105
    %p108 = scmp.ne.s32.totalorder %s91, %s107
    %p109 = scmp.eq.s32.totalorder %s15, 0
    %p110 = por %p108, %p109
    %p111 = scmp.le.s32.totalorder 1, %s9
    %p112 = scmp.lt.s32.totalorder %s9, 3
    %p113 = pnand %p111, %p112
    %p114 = pneg %p113
    // Predicated region
    $region9: #{se_block_v3.1} parent=5 // pred_check
      _
    $region10: #{se_block_v3.1} parent=5 // pred_check_branch
      %116 = sbr.rel (%p113) target = $region12
    $region11: #{se_block_v3.1} parent=5 // pred_region
      %s117 = ssub.s32 %s9, 1
      // Predicated region
      $region13: #{se_block_v3.1} parent=11 // pred_check
        %p118 = pneg %p56
      $region14: #{se_block_v3.1} parent=11 // pred_check_branch
        %120 = sbr.rel (%p118) target = $region16
      $region15: #{se_block_v3.1} parent=11 // pred_region
        _
      $region16: #{se_block_v3.1} parent=11 // pred_fallthru
        _
      // Predicated region
      $region17: #{se_block_v3.1} parent=11 // pred_check
        %p121 = pneg %p77
      $region18: #{se_block_v3.1} parent=11 // pred_check_branch
        %123 = sbr.rel (%p121) target = $region20
      $region19: #{se_block_v3.1} parent=11 // pred_region
        _
      $region20: #{se_block_v3.1} parent=11 // pred_fallthru
        _
    $region12: #{se_block_v3.1} parent=5 // pred_fallthru
      _
    %p124 = scmp.lt.s32.totalorder %s9, 2
    // Predicated region
    $region21: #{se_block_v3.1} parent=5 // pred_check
      %p125 = pneg %p124
    $region22: #{se_block_v3.1} parent=5 // pred_check_branch
      %127 = sbr.rel (%p125) target = $region24
    $region23: #{se_block_v3.1} parent=5 // pred_region
      // Predicated region
      $region25: #{se_block_v3.1} parent=23 // pred_check
        %p128 = pneg %p29
      $region26: #{se_block_v3.1} parent=23 // pred_check_branch
        %130 = sbr.rel (%p128) target = $region28
      $region27: #{se_block_v3.1} parent=23 // pred_region
        %p131 = scmp.lt.s32.totalorder %s9, 1
        %s132 = scalar_select %p131, %s9, 1
        %s133 = smul.addr %s132, 2
        %s134 = smul.addr %s133, 8
        %s135 = scalar_lea.vmem %s0, %s134
      $region28: #{se_block_v3.1} parent=23 // pred_fallthru
        _
    $region24: #{se_block_v3.1} parent=5 // pred_fallthru
      _
    %p136 = scmp.le.s32.totalorder 1, %s9
    %p137 = scmp.lt.s32.totalorder %s9, 3
    %p138 = pnand %p136, %p137
    %p139 = pneg %p138
    // Predicated region
    $region29: #{se_block_v3.1} parent=5 // pred_check
      _
    $region30: #{se_block_v3.1} parent=5 // pred_check_branch
      %141 = sbr.rel (%p138) target = $region32
    $region31: #{se_block_v3.1} parent=5 // pred_region
      %s142 = ssub.s32 %s9, 1
      %p143 = scmp.lt.s32.totalorder %s14, 1
      %s144 = scalar_select %p143, %s14, 1
      %s145 = smul.addr %s144, 2
      %s146 = smul.addr %s145, 8
      %s147 = scalar_lea.vmem %s0, %s146
      %p148 = pneg %p35
      %p149 = pneg %p32
      %p150 = pneg %p56
      %p151 = pneg %p53
      %p152 = pneg %p77
      %p153 = pneg %p74
      %p154 = pneg %p103
      %p155 = pneg %p100
      %p156 = scmp.lt.s32.totalorder %s14, 1
      %s157 = scalar_select %p156, %s14, 1
      %s158 = smul.addr %s157, 2
      %s159 = smul.addr %s158, 8
      %s160 = scalar_lea.vmem %s3, %s159
      %p161 = scmp.lt.s32.totalorder %s14, 1
      %s162 = scalar_select %p161, %s14, 1
      %s163 = smul.addr %s162, 2
      %s164 = smul.addr %s163, 8
      %s165 = scalar_lea.vmem %s0, %s164
      %p166 = scmp.lt.s32.totalorder %s14, 1
      %s167 = scalar_select %p166, %s14, 1
      %s168 = smul.addr %s167, 2
      %s169 = smul.addr %s168, 8
      %s170 = scalar_lea.vmem %s3, %s169
      %v171 = vld [vmem:[%s165] sm:$0xff]
      %v172 = vld [vmem:[%s165 + $0x8] sm:$0xff]
      %v173 = vadd.f32 %v171, %v172
      %174 = vadd.xlane.f32.xlu0 %v173
      %v175 = vpop.xlane.xlu0 %174
      %v176 = vmul.f32 %v175, 0.00390625
      %v177 = vld [vmem:[%s1] sm:$0xff]
      %v178 = vmul.f32 %v177, %v176
      %vm179 = vcmask 15360
      %v180 = vsel %vm179, %v178, 0.0
      %v181 = vrot.slane %v180, 4
      %v182 = vadd.f32 %v180, %v181
      %v183 = vrot.slane %v182, 2
      %v184 = vadd.f32 %v182, %v183
      %v185 = vrot.slane %v184, 1
      %v186 = vadd.f32 %v184, %v185
      %v187 = vmax.f32 %v186, 0.0
      %v188 = vld [vmem:[%s2] sm:$0xff]
      %v189 = vmul.f32 %v188, %v187
      %v190 = vsel %vm179, %v189, 0.0
      %191 = vadd.xlane.f32.xlu0 %v190
      %v192 = vpop.xlane.xlu0 %191
      %v193 = vsub.f32 0.0, %v192
      %v194 = vmul.f32 %v193, 1.442695
      %v195 = vpow.pop %v194
      %v196 = vadd.f32 %v195, 1.0
      %v197 = vrcp.pop %v196
      %v198 = vmul.f32 %v196, %v197
      %v199 = vsub.f32 1.0, %v198
      %v200 = vmul.f32 %v197, %v199
      %v201 = vadd.f32 %v197, %v200
      %vm202 = vweird.f32 %v196
      %vm203 = vweird.f32 %v197
      %vm204 = vmor %vm202, %vm203
      %v205 = vsel %vm204, %v197, %v201
      %v206 = vand.u32 2147483647, %v196
      %vm207 = vcmp.eq.f32.partialorder %v206, 8.507059e+37
      %v208 = vand.u32 %v196, 2147483648
      %v209 = vor.u32 1.1754944e-38, %v208
      %v210 = vsel %vm207, %v209, %v205
      %v211 = vmul.f32 1.0, %v210
      %v212 = vmul.f32 %v171, %v211
      %v213 = vmul.f32 %v172, %v211
      %214 = vst [vmem:[%s170] sm:$0xff] %v212
      %215 = vst [vmem:[%s170 + $0x8] sm:$0xff] %v213
      %p216 = scmp.lt.s32.totalorder %s14, 1
      %s217 = scalar_select %p216, %s14, 1
      %s218 = smul.addr %s217, 2
      %s219 = smul.addr %s218, 8
      %s220 = scalar_lea.vmem %s3, %s219
      // Predicated region
      $region33: #{se_block_v3.1} parent=31 // pred_check
        %p221 = pneg %p100
      $region34: #{se_block_v3.1} parent=31 // pred_check_branch
        %223 = sbr.rel (%p221) target = $region36
      $region35: #{se_block_v3.1} parent=31 // pred_region
        _
      $region36: #{se_block_v3.1} parent=31 // pred_fallthru
        _
    $region32: #{se_block_v3.1} parent=5 // pred_fallthru
      _
    %p224 = scmp.le.s32.totalorder 2, %s9
    // Predicated region
    $region37: #{se_block_v3.1} parent=5 // pred_check
      %p225 = pneg %p224
    $region38: #{se_block_v3.1} parent=5 // pred_check_branch
      %227 = sbr.rel (%p225) target = $region40
    $region39: #{se_block_v3.1} parent=5 // pred_region
      %s228 = ssub.s32 %s9, 2
      // Predicated region
      $region41: #{se_block_v3.1} parent=39 // pred_check
        %p229 = pneg %p106
      $region42: #{se_block_v3.1} parent=39 // pred_check_branch
        %231 = sbr.rel (%p229) target = $region44
      $region43: #{se_block_v3.1} parent=39 // pred_region
        %p232 = scmp.lt.s32.totalorder %s15, 1
        %s233 = scalar_select %p232, %s15, 1
        %s234 = smul.addr %s233, 2
        %s235 = smul.addr %s234, 8
        %s236 = scalar_lea.vmem %s3, %s235
      $region44: #{se_block_v3.1} parent=39 // pred_fallthru
        _
    $region40: #{se_block_v3.1} parent=5 // pred_fallthru
      _
  $region6: #{se_block_v3.1} parent=0 // loop_footer
    %s13 = sadd.s32 1, %s9
  $region7: #{se_block_v3.1} parent=0 // loop_footer_branch
    %8 = sbr.rel target = $region3
  $region8: #{se_block_v3.1} parent=0 // loop_exit
    _

</llo_original>
